<compile_context>
chip_gen: v7x
topology: tpu7x:2x2x1
jax: 0.10.0
libtpu: 0.0.40
codegen_flags: <defaults>
</compile_context>

<pallas_src>
import jax
import jax.numpy as jnp
from jax.experimental import pallas as pl
from jax.experimental.pallas import tpu as pltpu


def soft_q_kernel(s_ref, a_ref, w1s_ref, w1a_ref, b1_ref, w2_ref, b2_ref,
                  w3_ref, b3_ref, o_ref):
    # Layer 1: split-input matmul (replaces the concat). bf16 MXU inputs,
    # f32 accumulation, f32 elementwise path (v5e VPU has no bf16).
    s = s_ref[...].astype(jnp.bfloat16)
    a = a_ref[...].astype(jnp.bfloat16)
    h1 = jnp.dot(s, w1s_ref[...], preferred_element_type=jnp.float32)
    h1 = h1 + jnp.dot(a, w1a_ref[...], preferred_element_type=jnp.float32)
    h1 = jnp.maximum(h1 + b1_ref[...], 0.0)                    # (tb, H) f32

    # Layer 2
    h2 = jnp.dot(h1.astype(jnp.bfloat16), w2_ref[...],
                 preferred_element_type=jnp.float32)
    h2 = jnp.maximum(h2 + b2_ref[...], 0.0)                    # (tb, H) f32

    # Layer 3: output width 1 -> skip the nearly-empty (H,1) MXU pass and use
    # a per-lane multiply + cross-lane reduce (VALU + XLU), scalar bias from SMEM.
    q = jnp.sum(h2 * w3_ref[...], axis=-1, keepdims=True) + b3_ref[0]
    o_ref[...] = q.astype(o_ref.dtype)                         # (tb, 1)


def soft_q_forward(state, action, params, *, batch_tile=512):
    """state: (B, num_inputs) f32, action: (B, num_actions) f32 -> (B, 1) f32."""
    w1_s, w1_a, b1, w2, b2, w3, b3 = params
    B, num_inputs = state.shape
    num_actions = action.shape[1]
    H = w2.shape[0]

    # Batch tile: multiple of 8 sublanes, capped at `batch_tile`.
    tb = min(batch_tile, pl.next_power_of_2(max(B, 8)))
    tb = max(8, (tb // 8) * 8)
    Bp = pl.cdiv(B, tb) * tb
    if Bp != B:
        state = jnp.pad(state, ((0, Bp - B), (0, 0)))
        action = jnp.pad(action, ((0, Bp - B), (0, 0)))

    grid = (Bp // tb,)
    rep = lambda shape: pl.BlockSpec(shape, lambda i: tuple(0 for _ in shape))

    q = pl.pallas_call(
        soft_q_kernel,
        out_shape=jax.ShapeDtypeStruct((Bp, 1), jnp.float32),
        grid=grid,
        in_specs=[
            pl.BlockSpec((tb, num_inputs), lambda i: (i, 0)),     # state
            pl.BlockSpec((tb, num_actions), lambda i: (i, 0)),    # action
            rep((num_inputs, H)),                                 # w1_state (bf16)
            rep((num_actions, H)),                                # w1_action (bf16)
            rep((1, H)),                                          # b1 (f32)
            rep((H, H)),                                          # w2 (bf16)
            rep((1, H)),                                          # b2 (f32)
            rep((1, H)),                                          # w3 row (f32)
            pl.BlockSpec(memory_space=pltpu.MemorySpace.SMEM),    # b3 scalar
        ],
        out_specs=pl.BlockSpec((tb, 1), lambda i: (i, 0)),
        compiler_params=pltpu.CompilerParams(
            dimension_semantics=("parallel",)),
    )(state, action, w1_s, w1_a, b1, w2, b2, w3, b3)

    return q[:B] if Bp != B else q


def init_params(key, num_inputs, num_actions, hidden_size, init_w=0.003):
    """Mirrors nn.Linear defaults (uniform +-1/sqrt(fan_in)) and the explicit
    uniform(-init_w, init_w) on linear3. Weights for the MXU layers are bf16."""
    d_in = num_inputs + num_actions
    k1, k2, k3, k4, k5, k6 = jax.random.split(key, 6)

    def lin_init(kw, kb, fan_in, fan_out):
        bound = 1.0 / jnp.sqrt(fan_in)
        w = jax.random.uniform(kw, (fan_in, fan_out), jnp.float32, -bound, bound)
        b = jax.random.uniform(kb, (1, fan_out), jnp.float32, -bound, bound)
        return w, b

    w1, b1 = lin_init(k1, k2, d_in, hidden_size)
    w2, b2 = lin_init(k3, k4, hidden_size, hidden_size)
    w3 = jax.random.uniform(k5, (1, hidden_size), jnp.float32, -init_w, init_w)
    b3 = jax.random.uniform(k6, (1,), jnp.float32, -init_w, init_w)

    # Split W1 rows to match [state; action] concat order; bf16 MXU weights.
    w1_s = w1[:num_inputs].astype(jnp.bfloat16)
    w1_a = w1[num_inputs:].astype(jnp.bfloat16)
    return (w1_s, w1_a, b1, w2.astype(jnp.bfloat16), b2, w3, b3)


if __name__ == "__main__":
    num_inputs, num_actions, hidden_size = 24, 8, 128
    batch = 8

    key = jax.random.PRNGKey(0)
    kp, ks, ka = jax.random.split(key, 3)

    params = init_params(kp, num_inputs, num_actions, hidden_size)
    state = jax.random.normal(ks, (batch, num_inputs), jnp.float32)
    action = jax.random.normal(ka, (batch, num_actions), jnp.float32)

    q = soft_q_forward(state, action, params)
    jax.block_until_ready(q)

    # Pure-JAX reference mirroring the kernel's bf16-on-MXU / f32 elementwise math.
    w1_s, w1_a, b1, w2, b2, w3, b3 = params
    h1 = (jnp.dot(state.astype(jnp.bfloat16), w1_s, preferred_element_type=jnp.float32)
          + jnp.dot(action.astype(jnp.bfloat16), w1_a, preferred_element_type=jnp.float32))
    h1 = jnp.maximum(h1 + b1, 0.0)
    h2 = jnp.dot(h1.astype(jnp.bfloat16), w2, preferred_element_type=jnp.float32)
    h2 = jnp.maximum(h2 + b2, 0.0)
    q_ref = jnp.sum(h2 * w3, axis=-1, keepdims=True) + b3[0]

    assert q.shape == (batch, 1)
    assert jnp.allclose(q, q_ref, atol=1e-4, rtol=1e-4), (
        f"max abs err {jnp.max(jnp.abs(q - q_ref))}")

    print("KERNEL_OK")
</pallas_src>

<mosaic_0001>
module attributes {stable_mosaic.version = 11 : i64} {
  func.func @soft_q_kernel(%arg0: i32, %arg1: memref<8x24xf32, #tpu.memory_space<vmem>>, %arg2: memref<8x8xf32, #tpu.memory_space<vmem>>, %arg3: memref<24x128xbf16, #tpu.memory_space<vmem>>, %arg4: memref<8x128xbf16, #tpu.memory_space<vmem>>, %arg5: memref<1x128xf32, #tpu.memory_space<vmem>>, %arg6: memref<128x128xbf16, #tpu.memory_space<vmem>>, %arg7: memref<1x128xf32, #tpu.memory_space<vmem>>, %arg8: memref<1x128xf32, #tpu.memory_space<vmem>>, %arg9: memref<1xf32, #tpu.memory_space<smem>>, %arg10: memref<8x1xf32, #tpu.memory_space<vmem>>) attributes {dimension_semantics = [#tpu.dimension_semantics<parallel>], iteration_bounds = array<i64: 1>, scalar_prefetch = 0 : i64, scratch_operands = 0 : i64, tpu.core_type = #tpu.core_type<tc>, window_params = [{transform_indices = @transform_0, window_bounds = array<i64: 8, 24>}, {transform_indices = @transform_1, window_bounds = array<i64: 8, 8>}, {pipeline_mode = #tpu.pipeline_mode<synchronous>, transform_indices = @transform_2, window_bounds = array<i64: 24, 128>}, {pipeline_mode = #tpu.pipeline_mode<synchronous>, transform_indices = @transform_3, window_bounds = array<i64: 8, 128>}, {pipeline_mode = #tpu.pipeline_mode<synchronous>, transform_indices = @transform_4, window_bounds = array<i64: 1, 128>}, {pipeline_mode = #tpu.pipeline_mode<synchronous>, transform_indices = @transform_5, window_bounds = array<i64: 128, 128>}, {pipeline_mode = #tpu.pipeline_mode<synchronous>, transform_indices = @transform_6, window_bounds = array<i64: 1, 128>}, {pipeline_mode = #tpu.pipeline_mode<synchronous>, transform_indices = @transform_7, window_bounds = array<i64: 1, 128>}, {transform_indices = @transform_8, window_bounds = array<i64: 1>}, {transform_indices = @transform_9, window_bounds = array<i64: 8, 1>}]} {
    %c0 = arith.constant 0 : index
    %c0_0 = arith.constant 0 : index
    %0 = vector.load %arg1[%c0, %c0_0] : memref<8x24xf32, #tpu.memory_space<vmem>>, vector<8x24xf32>
    %1 = arith.truncf %0 : vector<8x24xf32> to vector<8x24xbf16>
    %c0_1 = arith.constant 0 : index
    %c0_2 = arith.constant 0 : index
    %2 = vector.load %arg2[%c0_1, %c0_2] : memref<8x8xf32, #tpu.memory_space<vmem>>, vector<8x8xf32>
    %3 = arith.truncf %2 : vector<8x8xf32> to vector<8x8xbf16>
    %c0_3 = arith.constant 0 : index
    %c0_4 = arith.constant 0 : index
    %4 = vector.load %arg3[%c0_3, %c0_4] : memref<24x128xbf16, #tpu.memory_space<vmem>>, vector<24x128xbf16>
    %cst = arith.constant dense<0.000000e+00> : vector<8x128xf32>
    %5 = tpu.matmul %1, %4, %cst {dimension_numbers = #tpu.dot_dimension_numbers<[1], [0], [0], [1], [0, 0, 1, 1], [], []>} : vector<8x24xbf16>, vector<24x128xbf16>, vector<8x128xf32> -> vector<8x128xf32>
    %c0_5 = arith.constant 0 : index
    %c0_6 = arith.constant 0 : index
    %6 = vector.load %arg4[%c0_5, %c0_6] : memref<8x128xbf16, #tpu.memory_space<vmem>>, vector<8x128xbf16>
    %cst_7 = arith.constant dense<0.000000e+00> : vector<8x128xf32>
    %7 = tpu.matmul %3, %6, %cst_7 {dimension_numbers = #tpu.dot_dimension_numbers<[1], [0], [0], [1], [0, 0, 1, 1], [], []>} : vector<8x8xbf16>, vector<8x128xbf16>, vector<8x128xf32> -> vector<8x128xf32>
    %8 = arith.addf %5, %7 : vector<8x128xf32>
    %c0_8 = arith.constant 0 : index
    %c0_9 = arith.constant 0 : index
    %9 = vector.load %arg5[%c0_8, %c0_9] : memref<1x128xf32, #tpu.memory_space<vmem>>, vector<1x128xf32>
    %10 = vector.broadcast %9 : vector<1x128xf32> to vector<8x128xf32>
    %11 = arith.addf %8, %10 : vector<8x128xf32>
    %cst_10 = arith.constant 0.000000e+00 : f32
    %12 = vector.broadcast %cst_10 : f32 to vector<8x128xf32>
    %13 = arith.maximumf %11, %12 : vector<8x128xf32>
    %14 = arith.truncf %13 : vector<8x128xf32> to vector<8x128xbf16>
    %c0_11 = arith.constant 0 : index
    %c0_12 = arith.constant 0 : index
    %15 = vector.load %arg6[%c0_11, %c0_12] : memref<128x128xbf16, #tpu.memory_space<vmem>>, vector<128x128xbf16>
    %cst_13 = arith.constant dense<0.000000e+00> : vector<8x128xf32>
    %16 = tpu.matmul %14, %15, %cst_13 {dimension_numbers = #tpu.dot_dimension_numbers<[1], [0], [0], [1], [0, 0, 1, 1], [], []>} : vector<8x128xbf16>, vector<128x128xbf16>, vector<8x128xf32> -> vector<8x128xf32>
    %c0_14 = arith.constant 0 : index
    %c0_15 = arith.constant 0 : index
    %17 = vector.load %arg7[%c0_14, %c0_15] : memref<1x128xf32, #tpu.memory_space<vmem>>, vector<1x128xf32>
    %18 = vector.broadcast %17 : vector<1x128xf32> to vector<8x128xf32>
    %19 = arith.addf %16, %18 : vector<8x128xf32>
    %cst_16 = arith.constant 0.000000e+00 : f32
    %20 = vector.broadcast %cst_16 : f32 to vector<8x128xf32>
    %21 = arith.maximumf %19, %20 : vector<8x128xf32>
    %c0_17 = arith.constant 0 : index
    %c0_18 = arith.constant 0 : index
    %22 = vector.load %arg8[%c0_17, %c0_18] : memref<1x128xf32, #tpu.memory_space<vmem>>, vector<1x128xf32>
    %23 = vector.broadcast %22 : vector<1x128xf32> to vector<8x128xf32>
    %24 = arith.mulf %21, %23 : vector<8x128xf32>
    %cst_19 = arith.constant dense<0.000000e+00> : vector<8xf32>
    %25 = vector.multi_reduction <add>, %24, %cst_19 [1] : vector<8x128xf32> to vector<8xf32>
    %26 = vector.shape_cast %25 : vector<8xf32> to vector<8x1xf32>
    %c0_20 = arith.constant 0 : index
    %27 = memref.load %arg9[%c0_20] : memref<1xf32, #tpu.memory_space<smem>>
    %28 = vector.broadcast %27 : f32 to vector<8x1xf32>
    %29 = arith.addf %26, %28 : vector<8x1xf32>
    %c0_21 = arith.constant 0 : index
    %c0_22 = arith.constant 0 : index
    %30 = vector.load %arg10[%c0_21, %c0_22] : memref<8x1xf32, #tpu.memory_space<vmem>>, vector<8x1xf32>
    tpu.vector_store %arg10[%c0_21, %c0_22], %29 {strides = array<i32>} : memref<8x1xf32, #tpu.memory_space<vmem>>, vector<8x1xf32>,
    return
  }
  func.func @transform_0(%arg0: i32) -> (i32, i32) {
    %c0_i32 = arith.constant 0 : i32
    %c0_i32_0 = arith.constant 0 : i32
    return %arg0, %c0_i32 : i32, i32
  }
  func.func @transform_1(%arg0: i32) -> (i32, i32) {
    %c0_i32 = arith.constant 0 : i32
    %c0_i32_0 = arith.constant 0 : i32
    return %arg0, %c0_i32 : i32, i32
  }
  func.func @transform_2(%arg0: i32) -> (i32, i32) {
    %c0_i32 = arith.constant 0 : i32
    %c0_i32_0 = arith.constant 0 : i32
    %c0_i32_1 = arith.constant 0 : i32
    return %c0_i32, %c0_i32_0 : i32, i32
  }
  func.func @transform_3(%arg0: i32) -> (i32, i32) {
    %c0_i32 = arith.constant 0 : i32
    %c0_i32_0 = arith.constant 0 : i32
    %c0_i32_1 = arith.constant 0 : i32
    return %c0_i32, %c0_i32_0 : i32, i32
  }
  func.func @transform_4(%arg0: i32) -> (i32, i32) {
    %c0_i32 = arith.constant 0 : i32
    %c0_i32_0 = arith.constant 0 : i32
    %c0_i32_1 = arith.constant 0 : i32
    return %c0_i32, %c0_i32_0 : i32, i32
  }
  func.func @transform_5(%arg0: i32) -> (i32, i32) {
    %c0_i32 = arith.constant 0 : i32
    %c0_i32_0 = arith.constant 0 : i32
    %c0_i32_1 = arith.constant 0 : i32
    return %c0_i32, %c0_i32_0 : i32, i32
  }
  func.func @transform_6(%arg0: i32) -> (i32, i32) {
    %c0_i32 = arith.constant 0 : i32
    %c0_i32_0 = arith.constant 0 : i32
    %c0_i32_1 = arith.constant 0 : i32
    return %c0_i32, %c0_i32_0 : i32, i32
  }
  func.func @transform_7(%arg0: i32) -> (i32, i32) {
    %c0_i32 = arith.constant 0 : i32
    %c0_i32_0 = arith.constant 0 : i32
    %c0_i32_1 = arith.constant 0 : i32
    return %c0_i32, %c0_i32_0 : i32, i32
  }
  func.func @transform_8(%arg0: i32) -> i32 {
    %c0_i32 = arith.constant 0 : i32
    %c0_i32_0 = arith.constant 0 : i32
    return %c0_i32 : i32
  }
  func.func @transform_9(%arg0: i32) -> (i32, i32) {
    %c0_i32 = arith.constant 0 : i32
    %c0_i32_0 = arith.constant 0 : i32
    return %arg0, %c0_i32 : i32, i32
  }
}

</mosaic_0001>

<llo_original>
// kernel: tpu_custom_call.1
$region0: #{tpu_custom_call.1}
  #allocation0 [shape = 'u32[]', space=smem, size = 0x4, offset = 0x4, fixed_abs, tag = 'smem constant byte address 0x4 - core index']
  #allocation1 [shape = 'u32[144,128]{1,0:T(1,128)}', space=vmem, size = 0x12000, scoped, tag = 'internal scratch']
  #allocation2 [shape = 'f32[1]{0:T(128)S(6)}', space=smem, size = 0x200, scoped, tag = 'scoped memory for tpu_custom_call.1']
  %s0 = inlined_call_operand.hbm [shape: f32[8,24], index: 0, kind: input, shape index: {}]
  %s1 = inlined_call_operand.hbm [shape: f32[8,8], index: 1, kind: input, shape index: {}]
  %s2 = inlined_call_operand.hbm [shape: bf16[24,128], index: 2, kind: input, shape index: {}]
  %s3 = inlined_call_operand.vmem [shape: bf16[8,128], index: 3, kind: input, shape index: {}]
  %s4 = inlined_call_operand.vmem [shape: f32[1,128], index: 4, kind: input, shape index: {}]
  %s5 = inlined_call_operand.hbm [shape: bf16[128,128], index: 5, kind: input, shape index: {}]
  %s6 = inlined_call_operand.vmem [shape: f32[1,128], index: 6, kind: input, shape index: {}]
  %s7 = inlined_call_operand.vmem [shape: f32[1,128], index: 7, kind: input, shape index: {}]
  %s8 = inlined_call_operand.<no memory space> [shape: f32[1], index: 8, kind: input, shape index: {}]
  %s9 = inlined_call_operand.vmem [shape: f32[8,1], index: 9, kind: output, shape index: {}]
  %s10 = sld [smem:[#allocation0]]
  $region62: #{tpu_custom_call.1} parent=0
    _
  %s12 = ssub.s32 1, %s10
  %s13 = scalar_select 0, %s12, %s10
  %14 = sst [smem:[#allocation2]] %s8
  $region1: #{tpu_custom_call.1} parent=0
    #allocation3 [shape = 'u8[4096]{0}', space=vmem, size = 0x1000, scoped, tag = 'input window, operand 0, single buffered']
    #allocation4 [shape = 's32[1]{0}', space=sflag, size = 0x4, scoped, tag = 'scoped memory for tpu_custom_call.1']
    #allocation5 [shape = 'u8[4096]{0}', space=vmem, size = 0x1000, scoped, tag = 'input window, operand 1, single buffered']
    #allocation6 [shape = 's32[1]{0}', space=sflag, size = 0x4, scoped, tag = 'scoped memory for tpu_custom_call.1']
    #allocation7 [shape = 'u8[6144]{0}', space=vmem, size = 0x1800, scoped, tag = 'input window, operand 2, single buffered']
    #allocation8 [shape = 'u8[32768]{0}', space=vmem, size = 0x8000, scoped, tag = 'input window, operand 5, single buffered']
    #allocation9 [shape = 's32[1]{0}', space=sflag, size = 0x4, scoped, tag = 'scoped memory for tpu_custom_call.1']
    %15 = vsyncpa [#allocation4], 0
    %16 = vsyncpa [#allocation6], 0
    %17 = vsyncpa [#allocation9], 0
    // Predicated region
    $region2: #{tpu_custom_call.1} parent=1 // pred_check
      _
    $region3: #{tpu_custom_call.1} parent=1 // pred_check_branch
      %19 = sbr.rel (0) target = $region5
    $region4: #{tpu_custom_call.1} parent=1 // pred_region
      %s21 = ssub.s32 128, 128
      %22 = vsyncadd [#allocation4], %s21
      %s24 = sshll.u32 [#allocation3], 4
      %s25 = int_to_ptr.vmem [resolvable:$true] %s24
      %27 = dma.hbm_to_vmem [thread:$0]  %s0, 128, %s25, [#allocation4]
    $region5: #{tpu_custom_call.1} parent=1 // pred_fallthru
      _
    // Predicated region
    $region6: #{tpu_custom_call.1} parent=1 // pred_check
      _
    $region7: #{tpu_custom_call.1} parent=1 // pred_check_branch
      %29 = sbr.rel (0) target = $region9
    $region8: #{tpu_custom_call.1} parent=1 // pred_region
      %s31 = ssub.s32 128, 128
      %32 = vsyncadd [#allocation6], %s31
      %s34 = sshll.u32 [#allocation5], 4
      %s35 = int_to_ptr.vmem [resolvable:$true] %s34
      %37 = dma.hbm_to_vmem [thread:$0]  %s1, 128, %s35, [#allocation6]
    $region9: #{tpu_custom_call.1} parent=1 // pred_fallthru
      _
    // Predicated region
    $region10: #{tpu_custom_call.1} parent=1 // pred_check
      _
    $region11: #{tpu_custom_call.1} parent=1 // pred_check_branch
      %39 = sbr.rel (0) target = $region13
    $region12: #{tpu_custom_call.1} parent=1 // pred_region
      %s41 = ssub.s32 192, 192
      %42 = vsyncadd [#allocation6], %s41
      %s43 = sshll.u32 [#allocation7], 4
      %s44 = int_to_ptr.vmem [resolvable:$true] %s43
      %49 = dma.hbm_to_vmem [thread:$0]  %s2, 192, %s44, [#allocation6], 64, 64, 4
    $region13: #{tpu_custom_call.1} parent=1 // pred_fallthru
      _
    // Predicated region
    $region14: #{tpu_custom_call.1} parent=1 // pred_check
      _
    $region15: #{tpu_custom_call.1} parent=1 // pred_check_branch
      %51 = sbr.rel (0) target = $region17
    $region16: #{tpu_custom_call.1} parent=1 // pred_region
      _
    $region17: #{tpu_custom_call.1} parent=1 // pred_fallthru
      _
    // Predicated region
    $region18: #{tpu_custom_call.1} parent=1 // pred_check
      _
    $region19: #{tpu_custom_call.1} parent=1 // pred_check_branch
      %53 = sbr.rel (0) target = $region21
    $region20: #{tpu_custom_call.1} parent=1 // pred_region
      _
    $region21: #{tpu_custom_call.1} parent=1 // pred_fallthru
      _
    // Predicated region
    $region22: #{tpu_custom_call.1} parent=1 // pred_check
      _
    $region23: #{tpu_custom_call.1} parent=1 // pred_check_branch
      %55 = sbr.rel (0) target = $region25
    $region24: #{tpu_custom_call.1} parent=1 // pred_region
      %s57 = ssub.s32 1024, 1024
      %58 = vsyncadd [#allocation9], %s57
      %s59 = sshll.u32 [#allocation8], 4
      %s60 = int_to_ptr.vmem [resolvable:$true] %s59
      %65 = dma.hbm_to_vmem [thread:$0]  %s5, 1024, %s60, [#allocation9], 64, 64, 4
    $region25: #{tpu_custom_call.1} parent=1 // pred_fallthru
      _
    // Predicated region
    $region26: #{tpu_custom_call.1} parent=1 // pred_check
      _
    $region27: #{tpu_custom_call.1} parent=1 // pred_check_branch
      %67 = sbr.rel (0) target = $region29
    $region28: #{tpu_custom_call.1} parent=1 // pred_region
      _
    $region29: #{tpu_custom_call.1} parent=1 // pred_fallthru
      _
    // Predicated region
    $region30: #{tpu_custom_call.1} parent=1 // pred_check
      _
    $region31: #{tpu_custom_call.1} parent=1 // pred_check_branch
      %69 = sbr.rel (0) target = $region33
    $region32: #{tpu_custom_call.1} parent=1 // pred_region
      _
    $region33: #{tpu_custom_call.1} parent=1 // pred_fallthru
      _
    // Predicated region
    $region34: #{tpu_custom_call.1} parent=1 // pred_check
      _
    $region35: #{tpu_custom_call.1} parent=1 // pred_check_branch
      %71 = sbr.rel (0) target = $region37
    $region36: #{tpu_custom_call.1} parent=1 // pred_region
      _
    $region37: #{tpu_custom_call.1} parent=1 // pred_fallthru
      _
    // Predicated region
    $region38: #{tpu_custom_call.1} parent=1 // pred_check
      _
    $region39: #{tpu_custom_call.1} parent=1 // pred_check_branch
      %73 = sbr.rel (0) target = $region41
    $region40: #{tpu_custom_call.1} parent=1 // pred_region
      %74 = dma.done [#allocation4], 128
    $region41: #{tpu_custom_call.1} parent=1 // pred_fallthru
      _
    // Predicated region
    $region42: #{tpu_custom_call.1} parent=1 // pred_check
      _
    $region43: #{tpu_custom_call.1} parent=1 // pred_check_branch
      %76 = sbr.rel (0) target = $region45
    $region44: #{tpu_custom_call.1} parent=1 // pred_region
      %77 = dma.done [#allocation6], 128
    $region45: #{tpu_custom_call.1} parent=1 // pred_fallthru
      _
    // Predicated region
    $region46: #{tpu_custom_call.1} parent=1 // pred_check
      _
    $region47: #{tpu_custom_call.1} parent=1 // pred_check_branch
      %79 = sbr.rel (0) target = $region49
    $region48: #{tpu_custom_call.1} parent=1 // pred_region
      %80 = dma.done [#allocation6], 192
    $region49: #{tpu_custom_call.1} parent=1 // pred_fallthru
      _
    // Predicated region
    $region50: #{tpu_custom_call.1} parent=1 // pred_check
      _
    $region51: #{tpu_custom_call.1} parent=1 // pred_check_branch
      %82 = sbr.rel (0) target = $region53
    $region52: #{tpu_custom_call.1} parent=1 // pred_region
      %83 = dma.done [#allocation9], 1024
    $region53: #{tpu_custom_call.1} parent=1 // pred_fallthru
      _
    %v85 = vld [vmem:[#allocation3] sm:$0xff]
    %v86 = vpack.c.bf16 %v85, %v85
    %v87 = vld [vmem:[#allocation5] sm:$0xff]
    %v88 = vpack.c.bf16 %v87, %v87
    %v89 = vld [vmem:[#allocation7] sm:$0xf]
    %v90 = vld [vmem:[#allocation7 + $0x4] sm:$0xf]
    %v91 = vld [vmem:[#allocation7 + $0x8] sm:$0xf]
    %v92 = vld [vmem:[%s3] sm:$0xf]
    %vm93 = vcmask 64512
    %v95 = vsel %vm93, %v88, 0
    %vm97 = vcmask 1043456
    %v99 = vsel %vm97, %v92, 0
    %101 = vmatprep.subr.bf16.mxu0 0
    %102 = vmatpush1.bf16.msra.mxu0 %v99
    %103 = vmatprep.subr.bf16.mxu0 0
    %104 = vmatpush1.bf16.msra.mxu0 0
    %105 = vmatprep.subr.bf16.mxu0 0
    %106 = vmatpush1.bf16.msra.mxu0 0
    %107 = vmatprep.subr.bf16.mxu0 0
    %108 = vmatpush1.bf16.msra.mxu0 0
    %109 = vmatprep.subr.bf16.mxu0 0
    %110 = vmatpush1.bf16.msra.mxu0 0
    %111 = vmatprep.subr.bf16.mxu0 0
    %112 = vmatpush1.bf16.msra.mxu0 0
    %113 = vmatprep.subr.bf16.mxu0 0
    %114 = vmatpush1.bf16.msra.mxu0 0
    %115 = vmatprep.subr.bf16.mxu0 0
    %116 = vmatpush1.bf16.msra.mxu0 0
    %117 = vmatprep.subr.bf16.mxu0 0
    %118 = vmatpush1.bf16.msra.mxu0 0
    %119 = vmatprep.subr.bf16.mxu0 0
    %120 = vmatpush1.bf16.msra.mxu0 0
    %121 = vmatprep.subr.bf16.mxu0 0
    %122 = vmatpush1.bf16.msra.mxu0 0
    %123 = vmatprep.subr.bf16.mxu0 0
    %124 = vmatpush1.bf16.msra.mxu0 0
    %125 = vmatprep.subr.bf16.mxu0 0
    %126 = vmatpush1.bf16.msra.mxu0 0
    %127 = vmatprep.subr.bf16.mxu0 0
    %128 = vmatpush1.bf16.msra.mxu0 0
    %129 = vmatprep.subr.bf16.mxu0 0
    %130 = vmatpush1.bf16.msra.mxu0 0
    %131 = vmatprep.subr.bf16.mxu0 0
    %132 = vmatpush1.bf16.msra.mxu0 0
    %133 = vmatprep.mubr.bf16.mxu0 0
    %134 = vmatmul.mubr.bf16.gmra.mrb[0].mxu0 %v95
    %v135 = vpop.f32.mrb[0].mxu0
    %v136 = vadd.f32 0.0, %v135
    %v137 = vpop.f32.mrb[0].mxu0
    %v138 = vpop.f32.mrb[0].mxu0
    %v139 = vpop.f32.mrb[0].mxu0
    %140 = vdwg.mxu0
    %v144 = vunpack.c.l.b16 %v89
    %v145 = vunpack.c.l.b16 %v90
    %v146 = vunpack.c.l.b16 %v91
    %v147 = vpack.c.b16 %v145, %v144
    %v148 = vpack.c.b16 %v146, %v146
    %vm150 = vcmask 195584
    %v152 = vsel %vm150, %v86, 0
    %v155 = vsel %vm97, %v148, 0
    %157 = vmatprep.subr.bf16.mxu0 0
    %158 = vmatpush1.bf16.msra.mxu0 %v147
    %159 = vmatprep.subr.bf16.mxu0 0
    %160 = vmatpush1.bf16.msra.mxu0 %v155
    %161 = vmatprep.subr.bf16.mxu0 0
    %162 = vmatpush1.bf16.msra.mxu0 0
    %163 = vmatprep.subr.bf16.mxu0 0
    %164 = vmatpush1.bf16.msra.mxu0 0
    %165 = vmatprep.subr.bf16.mxu0 0
    %166 = vmatpush1.bf16.msra.mxu0 0
    %167 = vmatprep.subr.bf16.mxu0 0
    %168 = vmatpush1.bf16.msra.mxu0 0
    %169 = vmatprep.subr.bf16.mxu0 0
    %170 = vmatpush1.bf16.msra.mxu0 0
    %171 = vmatprep.subr.bf16.mxu0 0
    %172 = vmatpush1.bf16.msra.mxu0 0
    %173 = vmatprep.subr.bf16.mxu0 0
    %174 = vmatpush1.bf16.msra.mxu0 0
    %175 = vmatprep.subr.bf16.mxu0 0
    %176 = vmatpush1.bf16.msra.mxu0 0
    %177 = vmatprep.subr.bf16.mxu0 0
    %178 = vmatpush1.bf16.msra.mxu0 0
    %179 = vmatprep.subr.bf16.mxu0 0
    %180 = vmatpush1.bf16.msra.mxu0 0
    %181 = vmatprep.subr.bf16.mxu0 0
    %182 = vmatpush1.bf16.msra.mxu0 0
    %183 = vmatprep.subr.bf16.mxu0 0
    %184 = vmatpush1.bf16.msra.mxu0 0
    %185 = vmatprep.subr.bf16.mxu0 0
    %186 = vmatpush1.bf16.msra.mxu0 0
    %187 = vmatprep.subr.bf16.mxu0 0
    %188 = vmatpush1.bf16.msra.mxu0 0
    %189 = vmatprep.mubr.bf16.mxu0 0
    %190 = vmatmul.mubr.bf16.gmra.mrb[0].mxu0 %v152
    %v191 = vpop.f32.mrb[0].mxu0
    %v192 = vadd.f32 %v136, %v191
    %v193 = vpop.f32.mrb[0].mxu0
    %v194 = vpop.f32.mrb[0].mxu0
    %v195 = vpop.f32.mrb[0].mxu0
    %196 = vdwg.mxu0
    %v197 = vld [vmem:[%s4] sm:$0x1]
    %v199 = vlaneseq
    %v200 = vshrl.u32 %v199, 7
    %v201 = vsub.s32 0, %v200
    %v202 = vrot.slane %v197, %v201
    %v204 = vadd.f32 %v192, %v202
    %v205 = vmax.f32 %v204, 0.0
    %v206 = vpack.c.bf16 %v205, %v205
    %v207 = vld [vmem:[#allocation8] sm:$0xf]
    %v208 = vld [vmem:[#allocation8 + $0x4] sm:$0xf]
    %v209 = vld [vmem:[#allocation8 + $0x8] sm:$0xf]
    %v210 = vld [vmem:[#allocation8 + $0xc] sm:$0xf]
    %v211 = vld [vmem:[#allocation8 + $0x10] sm:$0xf]
    %v212 = vld [vmem:[#allocation8 + $0x14] sm:$0xf]
    %v213 = vld [vmem:[#allocation8 + $0x18] sm:$0xf]
    %v214 = vld [vmem:[#allocation8 + $0x1c] sm:$0xf]
    %v215 = vld [vmem:[#allocation8 + $0x20] sm:$0xf]
    %v216 = vld [vmem:[#allocation8 + $0x24] sm:$0xf]
    %v217 = vld [vmem:[#allocation8 + $0x28] sm:$0xf]
    %v218 = vld [vmem:[#allocation8 + $0x2c] sm:$0xf]
    %v219 = vld [vmem:[#allocation8 + $0x30] sm:$0xf]
    %v220 = vld [vmem:[#allocation8 + $0x34] sm:$0xf]
    %v221 = vld [vmem:[#allocation8 + $0x38] sm:$0xf]
    %v222 = vld [vmem:[#allocation8 + $0x3c] sm:$0xf]
    %v223 = vld [vmem:[%s6] sm:$0x1]
    %v225 = vlaneseq
    %v226 = vshrl.u32 %v225, 7
    %v227 = vsub.s32 0, %v226
    %v228 = vrot.slane %v223, %v227
    %v246 = vunpack.c.l.b16 %v207
    %v247 = vunpack.c.l.b16 %v208
    %v248 = vunpack.c.l.b16 %v209
    %v249 = vunpack.c.l.b16 %v210
    %v250 = vunpack.c.l.b16 %v211
    %v251 = vunpack.c.l.b16 %v212
    %v252 = vunpack.c.l.b16 %v213
    %v253 = vunpack.c.l.b16 %v214
    %v254 = vunpack.c.l.b16 %v215
    %v255 = vunpack.c.l.b16 %v216
    %v256 = vunpack.c.l.b16 %v217
    %v257 = vunpack.c.l.b16 %v218
    %v258 = vunpack.c.l.b16 %v219
    %v259 = vunpack.c.l.b16 %v220
    %v260 = vunpack.c.l.b16 %v221
    %v261 = vunpack.c.l.b16 %v222
    %v262 = vpack.c.b16 %v247, %v246
    %v263 = vpack.c.b16 %v249, %v248
    %v264 = vpack.c.b16 %v251, %v250
    %v265 = vpack.c.b16 %v253, %v252
    %v266 = vpack.c.b16 %v255, %v254
    %v267 = vpack.c.b16 %v257, %v256
    %v268 = vpack.c.b16 %v259, %v258
    %v269 = vpack.c.b16 %v261, %v260
    %278 = vmatprep.subr.bf16.mxu0 0
    %279 = vmatpush1.bf16.msra.mxu0 %v262
    %280 = vmatprep.subr.bf16.mxu0 0
    %281 = vmatpush1.bf16.msra.mxu0 %v263
    %282 = vmatprep.subr.bf16.mxu0 0
    %283 = vmatpush1.bf16.msra.mxu0 %v264
    %284 = vmatprep.subr.bf16.mxu0 0
    %285 = vmatpush1.bf16.msra.mxu0 %v265
    %286 = vmatprep.subr.bf16.mxu0 0
    %287 = vmatpush1.bf16.msra.mxu0 %v266
    %288 = vmatprep.subr.bf16.mxu0 0
    %289 = vmatpush1.bf16.msra.mxu0 %v267
    %290 = vmatprep.subr.bf16.mxu0 0
    %291 = vmatpush1.bf16.msra.mxu0 %v268
    %292 = vmatprep.subr.bf16.mxu0 0
    %293 = vmatpush1.bf16.msra.mxu0 %v269
    %294 = vmatprep.subr.bf16.mxu0 0
    %295 = vmatpush1.bf16.msra.mxu0 0
    %296 = vmatprep.subr.bf16.mxu0 0
    %297 = vmatpush1.bf16.msra.mxu0 0
    %298 = vmatprep.subr.bf16.mxu0 0
    %299 = vmatpush1.bf16.msra.mxu0 0
    %300 = vmatprep.subr.bf16.mxu0 0
    %301 = vmatpush1.bf16.msra.mxu0 0
    %302 = vmatprep.subr.bf16.mxu0 0
    %303 = vmatpush1.bf16.msra.mxu0 0
    %304 = vmatprep.subr.bf16.mxu0 0
    %305 = vmatpush1.bf16.msra.mxu0 0
    %306 = vmatprep.subr.bf16.mxu0 0
    %307 = vmatpush1.bf16.msra.mxu0 0
    %308 = vmatprep.subr.bf16.mxu0 0
    %309 = vmatpush1.bf16.msra.mxu0 0
    %310 = vmatprep.mubr.bf16.mxu0 0
    %311 = vmatmul.mubr.bf16.gmra.mrb[0].mxu0 %v206
    %v312 = vpop.f32.mrb[0].mxu0
    %v313 = vadd.f32 %v228, %v312
    %v314 = vpop.f32.mrb[0].mxu0
    %v315 = vpop.f32.mrb[0].mxu0
    %v316 = vpop.f32.mrb[0].mxu0
    %317 = vdwg.mxu0
    %v318 = vmax.f32 %v313, 0.0
    %v319 = vld [vmem:[%s7] sm:$0x1]
    %v321 = vlaneseq
    %v322 = vshrl.u32 %v321, 7
    %v323 = vsub.s32 0, %v322
    %v324 = vrot.slane %v319, %v323
    %v326 = vmul.f32 %v318, %v324
    %327 = vadd.xlane.f32.xlu0 %v326
    %v328 = vpop.xlane.xlu0 %327
    %s329 = sld [smem:[#allocation2]]
    %v330 = vstv %s329
    %v331 = vadd.f32 %v328, %v330
    %vm332 = vcmask 7168
    %333 = vst.msk [vmem:[%s9] sm:$0xff] %vm332, %v331
    // Predicated region
    $region54: #{tpu_custom_call.1} parent=1 // pred_check
      _
    $region55: #{tpu_custom_call.1} parent=1 // pred_check_branch
      %335 = sbr.rel (0) target = $region57
    $region56: #{tpu_custom_call.1} parent=1 // pred_region
      _
    $region57: #{tpu_custom_call.1} parent=1 // pred_fallthru
      _
    // Predicated region
    $region58: #{tpu_custom_call.1} parent=1 // pred_check
      _
    $region59: #{tpu_custom_call.1} parent=1 // pred_check_branch
      %337 = sbr.rel (0) target = $region61
    $region60: #{tpu_custom_call.1} parent=1 // pred_region
      _
    $region61: #{tpu_custom_call.1} parent=1 // pred_fallthru
      _
    %338 = vsyncpa [#allocation4], 1
    %339 = vsyncpa [#allocation6], 1
    %340 = vsyncpa [#allocation9], 1

</llo_original>
